<compile_context>
chip_gen: v6e
topology: v6e:2x2x1
jax: 0.10.0
libtpu: 0.0.40
codegen_flags: <defaults>
</compile_context>

<pallas_src>
import functools
import math

import jax
import jax.numpy as jnp
from jax import lax
from jax.experimental import pallas as pl
from jax.experimental.pallas import tpu as pltpu


def _round_up(v, mult):
    return (v + mult - 1) // mult * mult


def _angular_loss_kernel(x_ref, w_ref, labels_ref, out_ref,
                         xn_ref, mmax_ref, lsum_ref, tgt_ref, *,
                         s, m, eps, loss_type, c_true, tc):
    k = pl.program_id(1)
    n_k = pl.num_programs(1)

    # ---- per-batch-tile init (runs once, at the first class tile) ----------
    @pl.when(k == 0)
    def _init():
        x = x_ref[...].astype(jnp.float32)                     # (tm, D)
        # F.normalize(x, p=2, dim=1) with eps=1e-12 guard, via rsqrt (EUP).
        ssq = jnp.sum(x * x, axis=1, keepdims=True)
        inv = lax.rsqrt(jnp.maximum(ssq, jnp.float32(1e-24)))  # max(||x||,1e-12)
        xn_ref[...] = (x * inv).astype(xn_ref.dtype)
        mmax_ref[...] = jnp.full_like(mmax_ref, -1e30)
        lsum_ref[...] = jnp.zeros_like(lsum_ref)
        tgt_ref[...] = jnp.zeros_like(tgt_ref)

    # ---- wf tile: contraction on dim 1 of both operands (no w.T) -----------
    w_tile = w_ref[...].astype(xn_ref.dtype)                   # (tc, D)
    wf = lax.dot_general(xn_ref[...], w_tile,
                         (((1,), (1,)), ((), ())),
                         preferred_element_type=jnp.float32)   # (tm, tc)
    z = jnp.float32(s) * wf

    labels = labels_ref[...]                                   # (tm, 1) int32
    col = lax.broadcasted_iota(jnp.int32, z.shape, 1) + k * tc
    onehot = col == labels
    valid = col < c_true

    # target cosine wf[i, labels[i]] — exactly one class tile contains it.
    tgt_ref[...] += jnp.sum(jnp.where(onehot, wf, 0.0), axis=1, keepdims=True)

    # online stabilized logsumexp over ALL valid classes.
    z_v = jnp.where(valid, z, jnp.float32(-1e30))
    m_old = mmax_ref[...]
    m_new = jnp.maximum(m_old, jnp.max(z_v, axis=1, keepdims=True))
    alpha = jnp.exp(m_old - m_new)
    lsum_ref[...] = alpha * lsum_ref[...] + jnp.sum(jnp.exp(z_v - m_new),
                                                    axis=1, keepdims=True)
    mmax_ref[...] = m_new

    # ---- finalize at the last class tile ------------------------------------
    @pl.when(k == n_k - 1)
    def _finalize():
        t = tgt_ref[...]                                       # (tm, 1)
        t_c = jnp.clip(t, -1.0 + eps, 1.0 - eps)
        if loss_type == 'cosface':
            numerator = s * (t - m)                            # no clip (matches torch)
        elif loss_type == 'arcface':
            # cos(acos(t_c) + m) == t_c*cos(m) - sqrt(1 - t_c^2)*sin(m)
            numerator = s * (t_c * jnp.float32(math.cos(m))
                             - jnp.sqrt(1.0 - t_c * t_c) * jnp.float32(math.sin(m)))
        else:  # sphereface
            numerator = s * jnp.cos(m * jnp.arccos(t_c))

        # log(denominator) = log( exp(numerator) + sum_{j != label} exp(s*wf_j) )
        # full-class sum_j exp(z_j) = exp(M) * l  (running logsumexp state)
        M = mmax_ref[...]
        l = lsum_ref[...]
        b = jnp.maximum(numerator, M)
        excl = l * jnp.exp(M - b) - jnp.exp(s * t - b)         # >= 0
        log_denom = b + jnp.log(jnp.exp(numerator - b) + excl)
        L = numerator - log_denom                              # (tm, 1)
        out_ref[...] = jnp.broadcast_to(L, out_ref.shape)      # lane-dense store


def angular_penalty_sm_loss(x, weight, labels, *, loss_type='arcface',
                            eps=1e-7, s=None, m=None,
                            matmul_dtype=jnp.float32,
                            block_n=256, block_c=512):
    """x: (N, in_features), weight: (out_features, in_features), labels: (N,) int.
    Returns scalar f32 loss. Set matmul_dtype=jnp.bfloat16 on v6e/v7x for MXU
    throughput (f32 accumulation is kept)."""
    loss_type = loss_type.lower()
    assert loss_type in ('arcface', 'sphereface', 'cosface')
    defaults = {'arcface': (64.0, 0.5), 'sphereface': (64.0, 1.35),
                'cosface': (30.0, 0.4)}
    ds_, dm_ = defaults[loss_type]
    # NOTE: mirrors the PyTorch module's `64.0 if not s else s` (s=0/m=0 fall
    # back to defaults) — kept intentionally for parity.
    s = ds_ if not s else s
    m = dm_ if not m else m

    n, d = x.shape
    c = weight.shape[0]

    # --- tile sizes & padding (lane-dense, MXU friendly) ---------------------
    tm = min(block_n, _round_up(n, 8))      # f32 sublane multiple
    tc = min(block_c, _round_up(c, 128))    # lane multiple
    d_pad = _round_up(d, 128)
    n_pad = _round_up(n, tm)
    c_pad = _round_up(c, tc)

    xp = jnp.zeros((n_pad, d_pad), jnp.float32).at[:n, :d].set(
        x.astype(jnp.float32))
    wp = jnp.zeros((c_pad, d_pad), jnp.float32).at[:c, :d].set(
        weight.astype(jnp.float32)).astype(matmul_dtype)
    lp = jnp.zeros((n_pad, 1), jnp.int32).at[:n, 0].set(labels.astype(jnp.int32))

    grid = (n_pad // tm, c_pad // tc)

    kernel = functools.partial(_angular_loss_kernel, s=float(s), m=float(m),
                               eps=float(eps), loss_type=loss_type,
                               c_true=c, tc=tc)

    out = pl.pallas_call(
        kernel,
        out_shape=jax.ShapeDtypeStruct((n_pad, 128), jnp.float32),
        grid_spec=pltpu.PrefetchScalarGridSpec(
            num_scalar_prefetch=0,
            grid=grid,
            in_specs=[
                pl.BlockSpec((tm, d_pad), lambda i, k: (i, 0)),   # x
                pl.BlockSpec((tc, d_pad), lambda i, k: (k, 0)),   # W
                pl.BlockSpec((tm, 1), lambda i, k: (i, 0)),       # labels
            ],
            out_specs=pl.BlockSpec((tm, 128), lambda i, k: (i, 0)),
            scratch_shapes=[
                pltpu.VMEM((tm, d_pad), matmul_dtype),   # cached normalized x
                pltpu.VMEM((tm, 1), jnp.float32),        # running max
                pltpu.VMEM((tm, 1), jnp.float32),        # running sum
                pltpu.VMEM((tm, 1), jnp.float32),        # target cosine
            ]),
        compiler_params=pltpu.CompilerParams(
            dimension_semantics=("parallel", "arbitrary"),
            vmem_limit_bytes=64 * 1024 * 1024),
    )(xp, wp, lp)

    per_row = out[:n, 0]          # mask padded rows; true-N mean in the wrapper
    return -jnp.mean(per_row)


def _reference(x, weight, labels, *, s, m, eps, loss_type):
    """Pure-JAX reference mirroring the PyTorch forward."""
    x_n = x / jnp.maximum(jnp.linalg.norm(x, axis=1, keepdims=True), 1e-12)
    wf = jnp.dot(x_n, weight.T, precision=lax.Precision.HIGHEST)
    tgt = wf[jnp.arange(x.shape[0]), labels]
    if loss_type == 'cosface':
        num = s * (tgt - m)
    elif loss_type == 'arcface':
        num = s * jnp.cos(jnp.arccos(jnp.clip(tgt, -1.0 + eps, 1.0 - eps)) + m)
    else:
        num = s * jnp.cos(m * jnp.arccos(jnp.clip(tgt, -1.0 + eps, 1.0 - eps)))
    mask = jax.nn.one_hot(labels, wf.shape[1], dtype=bool)
    excl_sum = jnp.sum(jnp.where(mask, 0.0, jnp.exp(s * wf)), axis=1)
    denom = jnp.exp(num) + excl_sum
    return -jnp.mean(num - jnp.log(denom))


if __name__ == "__main__":
    N, IN_FEATURES, OUT_FEATURES = 8, 32, 16
    key = jax.random.PRNGKey(0)
    kx, kw, kl = jax.random.split(key, 3)

    x = jax.random.normal(kx, (N, IN_FEATURES), dtype=jnp.float32)
    # Deterministic nn.Linear-style init: U(-1/sqrt(in), 1/sqrt(in))
    bound = 1.0 / (IN_FEATURES ** 0.5)
    weight = jax.random.uniform(kw, (OUT_FEATURES, IN_FEATURES),
                                minval=-bound, maxval=bound, dtype=jnp.float32)
    labels = jax.random.randint(kl, (N,), 0, OUT_FEATURES, dtype=jnp.int32)

    params = {'arcface': (64.0, 0.5), 'sphereface': (64.0, 1.35),
              'cosface': (30.0, 0.4)}

    # f32 MXU path: tight comparison against the reference for all loss types.
    for lt, (s_def, m_def) in params.items():
        loss = angular_penalty_sm_loss(x, weight, labels, loss_type=lt)
        loss = jax.block_until_ready(loss)
        ref = _reference(x, weight, labels, s=s_def, m=m_def, eps=1e-7,
                         loss_type=lt)
        assert jnp.allclose(loss, ref, rtol=2e-3, atol=2e-3), (lt, loss, ref)

    # bf16 MXU path (recommended on v6e/v7x): looser tolerance, f32 accumulation.
    loss_bf16 = angular_penalty_sm_loss(x, weight, labels, loss_type='arcface',
                                        matmul_dtype=jnp.bfloat16)
    loss_bf16 = jax.block_until_ready(loss_bf16)
    ref_arc = _reference(x, weight, labels, s=64.0, m=0.5, eps=1e-7,
                         loss_type='arcface')
    assert jnp.isfinite(loss_bf16)
    assert jnp.allclose(loss_bf16, ref_arc, rtol=5e-2, atol=1.0), (loss_bf16, ref_arc)

    print("KERNEL_OK")
</pallas_src>

<mosaic_0001>
module attributes {stable_mosaic.version = 11 : i64} {
  func.func @_angular_loss_kernel(%arg0: i32, %arg1: i32, %arg2: memref<8x128xf32, #tpu.memory_space<vmem>>, %arg3: memref<128x128xf32, #tpu.memory_space<vmem>>, %arg4: memref<8x1xi32, #tpu.memory_space<vmem>>, %arg5: memref<8x128xf32, #tpu.memory_space<vmem>>, %arg6: memref<8x128xf32, #tpu.memory_space<vmem>>, %arg7: memref<8x1xf32, #tpu.memory_space<vmem>>, %arg8: memref<8x1xf32, #tpu.memory_space<vmem>>, %arg9: memref<8x1xf32, #tpu.memory_space<vmem>>) attributes {dimension_semantics = [#tpu.dimension_semantics<parallel>, #tpu.dimension_semantics<arbitrary>], iteration_bounds = array<i64: 1, 1>, scalar_prefetch = 0 : i64, scratch_operands = 4 : i64, tpu.core_type = #tpu.core_type<tc>, window_params = [{transform_indices = @transform_0, window_bounds = array<i64: 8, 128>}, {transform_indices = @transform_1, window_bounds = array<i64: 128, 128>}, {transform_indices = @transform_2, window_bounds = array<i64: 8, 1>}, {transform_indices = @transform_3, window_bounds = array<i64: 8, 128>}]} {
    %c0_i32 = arith.constant 0 : i32
    %0 = arith.cmpi eq, %arg1, %c0_i32 : i32
    %1 = arith.extui %0 : i1 to i32
    %c0_i32_0 = arith.constant 0 : i32
    %2 = arith.cmpi ne, %1, %c0_i32_0 : i32
    scf.if %2 {
      %c0_26 = arith.constant 0 : index
      %c0_27 = arith.constant 0 : index
      %45 = vector.load %arg2[%c0_26, %c0_27] : memref<8x128xf32, #tpu.memory_space<vmem>>, vector<8x128xf32>
      %46 = arith.mulf %45, %45 : vector<8x128xf32>
      %cst_28 = arith.constant dense<0.000000e+00> : vector<8xf32>
      %47 = vector.multi_reduction <add>, %46, %cst_28 [1] : vector<8x128xf32> to vector<8xf32>
      %48 = vector.shape_cast %47 : vector<8xf32> to vector<8x1xf32>
      %cst_29 = arith.constant 1.000000e-24 : f32
      %49 = vector.broadcast %cst_29 : f32 to vector<8x1xf32>
      %50 = arith.maximumf %48, %49 : vector<8x1xf32>
      %51 = math.rsqrt %50 : vector<8x1xf32>
      %52 = vector.broadcast %51 : vector<8x1xf32> to vector<8x128xf32>
      %53 = arith.mulf %45, %52 : vector<8x128xf32>
      %c0_30 = arith.constant 0 : index
      %c0_31 = arith.constant 0 : index
      %54 = vector.load %arg6[%c0_30, %c0_31] : memref<8x128xf32, #tpu.memory_space<vmem>>, vector<8x128xf32>
      tpu.vector_store %arg6[%c0_30, %c0_31], %53 {strides = array<i32>} : memref<8x128xf32, #tpu.memory_space<vmem>>, vector<8x128xf32>,
      %cst_32 = arith.constant -1.000000e+30 : f32
      %55 = vector.broadcast %cst_32 : f32 to vector<8x1xf32>
      %c0_33 = arith.constant 0 : index
      %c0_34 = arith.constant 0 : index
      %56 = vector.load %arg7[%c0_33, %c0_34] : memref<8x1xf32, #tpu.memory_space<vmem>>, vector<8x1xf32>
      tpu.vector_store %arg7[%c0_33, %c0_34], %55 {strides = array<i32>} : memref<8x1xf32, #tpu.memory_space<vmem>>, vector<8x1xf32>,
      %cst_35 = arith.constant 0.000000e+00 : f32
      %57 = vector.broadcast %cst_35 : f32 to vector<8x1xf32>
      %c0_36 = arith.constant 0 : index
      %c0_37 = arith.constant 0 : index
      %58 = vector.load %arg8[%c0_36, %c0_37] : memref<8x1xf32, #tpu.memory_space<vmem>>, vector<8x1xf32>
      tpu.vector_store %arg8[%c0_36, %c0_37], %57 {strides = array<i32>} : memref<8x1xf32, #tpu.memory_space<vmem>>, vector<8x1xf32>,
      %cst_38 = arith.constant 0.000000e+00 : f32
      %59 = vector.broadcast %cst_38 : f32 to vector<8x1xf32>
      %c0_39 = arith.constant 0 : index
      %c0_40 = arith.constant 0 : index
      %60 = vector.load %arg9[%c0_39, %c0_40] : memref<8x1xf32, #tpu.memory_space<vmem>>, vector<8x1xf32>
      tpu.vector_store %arg9[%c0_39, %c0_40], %59 {strides = array<i32>} : memref<8x1xf32, #tpu.memory_space<vmem>>, vector<8x1xf32>,
    } else {
    }
    %c0 = arith.constant 0 : index
    %c0_1 = arith.constant 0 : index
    %3 = vector.load %arg3[%c0, %c0_1] : memref<128x128xf32, #tpu.memory_space<vmem>>, vector<128x128xf32>
    %c0_2 = arith.constant 0 : index
    %c0_3 = arith.constant 0 : index
    %4 = vector.load %arg6[%c0_2, %c0_3] : memref<8x128xf32, #tpu.memory_space<vmem>>, vector<8x128xf32>
    %cst = arith.constant dense<0.000000e+00> : vector<8x128xf32>
    %5 = tpu.matmul %4, %3, %cst {dimension_numbers = #tpu.dot_dimension_numbers<[1], [1], [0], [0], [0, 0, 1, 0], [], []>} : vector<8x128xf32>, vector<128x128xf32>, vector<8x128xf32> -> vector<8x128xf32>
    %cst_4 = arith.constant 6.400000e+01 : f32
    %6 = vector.broadcast %cst_4 : f32 to vector<8x128xf32>
    %7 = arith.mulf %6, %5 : vector<8x128xf32>
    %c0_5 = arith.constant 0 : index
    %c0_6 = arith.constant 0 : index
    %8 = vector.load %arg4[%c0_5, %c0_6] : memref<8x1xi32, #tpu.memory_space<vmem>>, vector<8x1xi32>
    %9 = tpu.iota {dimensions = array<i32: 1>} : vector<8x128xi32>
    %c128_i32 = arith.constant 128 : i32
    %10 = arith.muli %arg1, %c128_i32 : i32
    %11 = vector.broadcast %10 : i32 to vector<8x128xi32>
    %12 = arith.addi %9, %11 : vector<8x128xi32>
    %13 = vector.broadcast %8 : vector<8x1xi32> to vector<8x128xi32>
    %14 = arith.cmpi eq, %12, %13 : vector<8x128xi32>
    %c16_i32 = arith.constant 16 : i32
    %15 = vector.broadcast %c16_i32 : i32 to vector<8x128xi32>
    %16 = arith.cmpi slt, %12, %15 : vector<8x128xi32>
    %c0_7 = arith.constant 0 : index
    %c0_8 = arith.constant 0 : index
    %17 = vector.load %arg9[%c0_7, %c0_8] : memref<8x1xf32, #tpu.memory_space<vmem>>, vector<8x1xf32>
    %cst_9 = arith.constant 0.000000e+00 : f32
    %18 = vector.broadcast %cst_9 : f32 to vector<8x128xf32>
    %19 = arith.select %14, %5, %18 : vector<8x128xi1>, vector<8x128xf32>
    %cst_10 = arith.constant dense<0.000000e+00> : vector<8xf32>
    %20 = vector.multi_reduction <add>, %19, %cst_10 [1] : vector<8x128xf32> to vector<8xf32>
    %21 = vector.shape_cast %20 : vector<8xf32> to vector<8x1xf32>
    %22 = arith.addf %17, %21 : vector<8x1xf32>
    %c0_11 = arith.constant 0 : index
    %c0_12 = arith.constant 0 : index
    %23 = vector.load %arg9[%c0_11, %c0_12] : memref<8x1xf32, #tpu.memory_space<vmem>>, vector<8x1xf32>
    tpu.vector_store %arg9[%c0_11, %c0_12], %22 {strides = array<i32>} : memref<8x1xf32, #tpu.memory_space<vmem>>, vector<8x1xf32>,
    %cst_13 = arith.constant -1.000000e+30 : f32
    %24 = vector.broadcast %cst_13 : f32 to vector<8x128xf32>
    %25 = arith.select %16, %7, %24 : vector<8x128xi1>, vector<8x128xf32>
    %c0_14 = arith.constant 0 : index
    %c0_15 = arith.constant 0 : index
    %26 = vector.load %arg7[%c0_14, %c0_15] : memref<8x1xf32, #tpu.memory_space<vmem>>, vector<8x1xf32>
    %cst_16 = arith.constant dense<0xFF800000> : vector<8xf32>
    %27 = vector.multi_reduction <maximumf>, %25, %cst_16 [1] : vector<8x128xf32> to vector<8xf32>
    %28 = vector.shape_cast %27 : vector<8xf32> to vector<8x1xf32>
    %29 = arith.maximumf %26, %28 : vector<8x1xf32>
    %30 = arith.subf %26, %29 : vector<8x1xf32>
    %31 = math.exp %30 : vector<8x1xf32>
    %c0_17 = arith.constant 0 : index
    %c0_18 = arith.constant 0 : index
    %32 = vector.load %arg8[%c0_17, %c0_18] : memref<8x1xf32, #tpu.memory_space<vmem>>, vector<8x1xf32>
    %33 = arith.mulf %31, %32 : vector<8x1xf32>
    %34 = vector.broadcast %29 : vector<8x1xf32> to vector<8x128xf32>
    %35 = arith.subf %25, %34 : vector<8x128xf32>
    %36 = math.exp %35 : vector<8x128xf32>
    %cst_19 = arith.constant dense<0.000000e+00> : vector<8xf32>
    %37 = vector.multi_reduction <add>, %36, %cst_19 [1] : vector<8x128xf32> to vector<8xf32>
    %38 = vector.shape_cast %37 : vector<8xf32> to vector<8x1xf32>
    %39 = arith.addf %33, %38 : vector<8x1xf32>
    %c0_20 = arith.constant 0 : index
    %c0_21 = arith.constant 0 : index
    %40 = vector.load %arg8[%c0_20, %c0_21] : memref<8x1xf32, #tpu.memory_space<vmem>>, vector<8x1xf32>
    tpu.vector_store %arg8[%c0_20, %c0_21], %39 {strides = array<i32>} : memref<8x1xf32, #tpu.memory_space<vmem>>, vector<8x1xf32>,
    %c0_22 = arith.constant 0 : index
    %c0_23 = arith.constant 0 : index
    %41 = vector.load %arg7[%c0_22, %c0_23] : memref<8x1xf32, #tpu.memory_space<vmem>>, vector<8x1xf32>
    tpu.vector_store %arg7[%c0_22, %c0_23], %29 {strides = array<i32>} : memref<8x1xf32, #tpu.memory_space<vmem>>, vector<8x1xf32>,
    %c0_i32_24 = arith.constant 0 : i32
    %42 = arith.cmpi eq, %arg1, %c0_i32_24 : i32
    %43 = arith.extui %42 : i1 to i32
    %c0_i32_25 = arith.constant 0 : i32
    %44 = arith.cmpi ne, %43, %c0_i32_25 : i32
    scf.if %44 {
      %c0_26 = arith.constant 0 : index
      %c0_27 = arith.constant 0 : index
      %45 = vector.load %arg9[%c0_26, %c0_27] : memref<8x1xf32, #tpu.memory_space<vmem>>, vector<8x1xf32>
      %cst_28 = arith.constant -0.99999988 : f32
      %cst_29 = arith.constant 0.99999988 : f32
      %46 = vector.broadcast %cst_28 : f32 to vector<8x1xf32>
      %47 = arith.maximumf %46, %45 : vector<8x1xf32>
      %48 = vector.broadcast %cst_29 : f32 to vector<8x1xf32>
      %49 = arith.minimumf %48, %47 : vector<8x1xf32>
      %cst_30 = arith.constant 0.87758255 : f32
      %50 = vector.broadcast %cst_30 : f32 to vector<8x1xf32>
      %51 = arith.mulf %49, %50 : vector<8x1xf32>
      %52 = arith.mulf %49, %49 : vector<8x1xf32>
      %cst_31 = arith.constant 1.000000e+00 : f32
      %53 = vector.broadcast %cst_31 : f32 to vector<8x1xf32>
      %54 = arith.subf %53, %52 : vector<8x1xf32>
      %55 = math.sqrt %54 : vector<8x1xf32>
      %cst_32 = arith.constant 0.47942555 : f32
      %56 = vector.broadcast %cst_32 : f32 to vector<8x1xf32>
      %57 = arith.mulf %55, %56 : vector<8x1xf32>
      %58 = arith.subf %51, %57 : vector<8x1xf32>
      %cst_33 = arith.constant 6.400000e+01 : f32
      %59 = vector.broadcast %cst_33 : f32 to vector<8x1xf32>
      %60 = arith.mulf %59, %58 : vector<8x1xf32>
      %c0_34 = arith.constant 0 : index
      %c0_35 = arith.constant 0 : index
      %61 = vector.load %arg7[%c0_34, %c0_35] : memref<8x1xf32, #tpu.memory_space<vmem>>, vector<8x1xf32>
      %c0_36 = arith.constant 0 : index
      %c0_37 = arith.constant 0 : index
      %62 = vector.load %arg8[%c0_36, %c0_37] : memref<8x1xf32, #tpu.memory_space<vmem>>, vector<8x1xf32>
      %63 = arith.maximumf %60, %61 : vector<8x1xf32>
      %64 = arith.subf %61, %63 : vector<8x1xf32>
      %65 = math.exp %64 : vector<8x1xf32>
      %66 = arith.mulf %62, %65 : vector<8x1xf32>
      %cst_38 = arith.constant 6.400000e+01 : f32
      %67 = vector.broadcast %cst_38 : f32 to vector<8x1xf32>
      %68 = arith.mulf %67, %45 : vector<8x1xf32>
      %69 = arith.subf %68, %63 : vector<8x1xf32>
      %70 = math.exp %69 : vector<8x1xf32>
      %71 = arith.subf %66, %70 : vector<8x1xf32>
      %72 = arith.subf %60, %63 : vector<8x1xf32>
      %73 = math.exp %72 : vector<8x1xf32>
      %74 = arith.addf %73, %71 : vector<8x1xf32>
      %75 = math.log %74 : vector<8x1xf32>
      %76 = arith.addf %63, %75 : vector<8x1xf32>
      %77 = arith.subf %60, %76 : vector<8x1xf32>
      %78 = vector.shape_cast %77 : vector<8x1xf32> to vector<8x1xf32>
      %79 = vector.broadcast %78 : vector<8x1xf32> to vector<8x128xf32>
      %c0_39 = arith.constant 0 : index
      %c0_40 = arith.constant 0 : index
      %80 = vector.load %arg5[%c0_39, %c0_40] : memref<8x128xf32, #tpu.memory_space<vmem>>, vector<8x128xf32>
      tpu.vector_store %arg5[%c0_39, %c0_40], %79 {strides = array<i32>} : memref<8x128xf32, #tpu.memory_space<vmem>>, vector<8x128xf32>,
    } else {
    }
    return
  }
  func.func @transform_0(%arg0: i32, %arg1: i32) -> (i32, i32) {
    %c0_i32 = arith.constant 0 : i32
    %c0_i32_0 = arith.constant 0 : i32
    return %arg0, %c0_i32 : i32, i32
  }
  func.func @transform_1(%arg0: i32, %arg1: i32) -> (i32, i32) {
    %c0_i32 = arith.constant 0 : i32
    %c0_i32_0 = arith.constant 0 : i32
    return %arg1, %c0_i32 : i32, i32
  }
  func.func @transform_2(%arg0: i32, %arg1: i32) -> (i32, i32) {
    %c0_i32 = arith.constant 0 : i32
    %c0_i32_0 = arith.constant 0 : i32
    return %arg0, %c0_i32 : i32, i32
  }
  func.func @transform_3(%arg0: i32, %arg1: i32) -> (i32, i32) {
    %c0_i32 = arith.constant 0 : i32
    %c0_i32_0 = arith.constant 0 : i32
    return %arg0, %c0_i32 : i32, i32
  }
}

</mosaic_0001>

<llo_original>
// kernel: tpu_custom_call.1
$region0: #{tpu_custom_call.1}
  #allocation0 [shape = 'u32[]', space=smem, size = 0x4, offset = 0x4, fixed_abs, tag = 'smem constant byte address 0x4 - core index']
  #allocation1 [shape = 'u32[144,128]{1,0:T(1,128)}', space=vmem, size = 0x12000, scoped, tag = 'internal scratch']
  #allocation2 [shape = 'f32[8,128]{1,0:T(8,128)}', space=vmem, size = 0x1000, scoped, tag = 'scratch operand']
  #allocation3 [shape = 'f32[8,1]{1,0:T(8,128)}', space=vmem, size = 0x1000, scoped, tag = 'scratch operand']
  #allocation4 [shape = 'f32[8,1]{1,0:T(8,128)}', space=vmem, size = 0x1000, scoped, tag = 'scratch operand']
  #allocation5 [shape = 'f32[8,1]{1,0:T(8,128)}', space=vmem, size = 0x1000, scoped, tag = 'scratch operand']
  %s0 = inlined_call_operand.vmem [shape: f32[8,128], index: 0, kind: input, shape index: {}]
  %s1 = inlined_call_operand.hbm [shape: f32[128,128], index: 1, kind: input, shape index: {}]
  %s2 = inlined_call_operand.vmem [shape: s32[8,1], index: 2, kind: input, shape index: {}]
  %s3 = inlined_call_operand.hbm [shape: f32[8,128], index: 3, kind: output, shape index: {}]
  %s4 = sld [smem:[#allocation0]]
  $region34: #{tpu_custom_call.1} parent=0
    _
  %s6 = ssub.s32 1, %s4
  %s7 = scalar_select 0, %s6, %s4
  $region1: #{tpu_custom_call.1} parent=0
    #allocation6 [shape = 'u8[65536]{0}', space=vmem, size = 0x10000, scoped, tag = 'input window, operand 1, single buffered']
    #allocation7 [shape = 's32[1]{0}', space=sflag, size = 0x4, scoped, tag = 'scoped memory for tpu_custom_call.1']
    #allocation8 [shape = 's32[1]{0}', space=sflag, size = 0x4, scoped, tag = 'scoped memory for tpu_custom_call.1']
    #allocation9 [shape = 'u8[4096]{0}', space=vmem, size = 0x1000, scoped, tag = 'output window, operand 0, single buffered']
    %8 = vsyncpa [#allocation7], 0
    %9 = vsyncpa [#allocation8], 0
    // Predicated region
    $region2: #{tpu_custom_call.1} parent=1 // pred_check
      _
    $region3: #{tpu_custom_call.1} parent=1 // pred_check_branch
      %11 = sbr.rel (0) target = $region5
    $region4: #{tpu_custom_call.1} parent=1 // pred_region
      _
    $region5: #{tpu_custom_call.1} parent=1 // pred_fallthru
      _
    // Predicated region
    $region6: #{tpu_custom_call.1} parent=1 // pred_check
      _
    $region7: #{tpu_custom_call.1} parent=1 // pred_check_branch
      %13 = sbr.rel (0) target = $region9
    $region8: #{tpu_custom_call.1} parent=1 // pred_region
      %s15 = ssub.s32 2048, 2048
      %16 = vsyncadd [#allocation7], %s15
      %s17 = sshll.u32 [#allocation6], 4
      %s18 = int_to_ptr.vmem [resolvable:$true] %s17
      %23 = dma.hbm_to_vmem [thread:$0]  %s1, 2048, %s18, [#allocation7], 128, 128, 8
    $region9: #{tpu_custom_call.1} parent=1 // pred_fallthru
      _
    // Predicated region
    $region10: #{tpu_custom_call.1} parent=1 // pred_check
      _
    $region11: #{tpu_custom_call.1} parent=1 // pred_check_branch
      %25 = sbr.rel (0) target = $region13
    $region12: #{tpu_custom_call.1} parent=1 // pred_region
      _
    $region13: #{tpu_custom_call.1} parent=1 // pred_fallthru
      _
    // Predicated region
    $region14: #{tpu_custom_call.1} parent=1 // pred_check
      _
    $region15: #{tpu_custom_call.1} parent=1 // pred_check_branch
      %27 = sbr.rel (0) target = $region17
    $region16: #{tpu_custom_call.1} parent=1 // pred_region
      %28 = dma.done [#allocation7], 2048
    $region17: #{tpu_custom_call.1} parent=1 // pred_fallthru
      _
    %p29 = scmp.eq.s32.totalorder 0, 0
    // Predicated region
    $region18: #{tpu_custom_call.1} parent=1 // pred_check
      %p30 = pneg %p29
    $region19: #{tpu_custom_call.1} parent=1 // pred_check_branch
      %32 = sbr.rel (%p30) target = $region21
    $region20: #{tpu_custom_call.1} parent=1 // pred_region
      %v33 = vld [vmem:[%s0] sm:$0xff]
      %v34 = vmul.f32 %v33, %v33
      %35 = vadd.xlane.f32.xlu0 %v34
      %v36 = vpop.xlane.xlu0 %35
      %v37 = vmax.f32 %v36, 1e-24
      %v38 = vrsqrt.pop %v37
      %v39 = vmul.f32 %v33, %v38
      %40 = vst [vmem:[#allocation2] sm:$0xff] %v39
      %vm41 = vcmask 7168
      %42 = vst.msk [vmem:[#allocation3] sm:$0xff] %vm41, -1e+30
      %43 = vst.msk [vmem:[#allocation4] sm:$0xff] %vm41, 0.0
      %44 = vst.msk [vmem:[#allocation5] sm:$0xff] %vm41, 0.0
    $region21: #{tpu_custom_call.1} parent=1 // pred_fallthru
      _
    %v45 = vld [vmem:[#allocation6] sm:$0xff]
    %v46 = vld [vmem:[#allocation6 + $0x8] sm:$0xff]
    %v47 = vld [vmem:[#allocation6 + $0x10] sm:$0xff]
    %v48 = vld [vmem:[#allocation6 + $0x18] sm:$0xff]
    %v49 = vld [vmem:[#allocation6 + $0x20] sm:$0xff]
    %v50 = vld [vmem:[#allocation6 + $0x28] sm:$0xff]
    %v51 = vld [vmem:[#allocation6 + $0x30] sm:$0xff]
    %v52 = vld [vmem:[#allocation6 + $0x38] sm:$0xff]
    %v53 = vld [vmem:[#allocation6 + $0x40] sm:$0xff]
    %v54 = vld [vmem:[#allocation6 + $0x48] sm:$0xff]
    %v55 = vld [vmem:[#allocation6 + $0x50] sm:$0xff]
    %v56 = vld [vmem:[#allocation6 + $0x58] sm:$0xff]
    %v57 = vld [vmem:[#allocation6 + $0x60] sm:$0xff]
    %v58 = vld [vmem:[#allocation6 + $0x68] sm:$0xff]
    %v59 = vld [vmem:[#allocation6 + $0x70] sm:$0xff]
    %v60 = vld [vmem:[#allocation6 + $0x78] sm:$0xff]
    %v61 = vld [vmem:[#allocation2] sm:$0xff]
    %62 = vmatprep.subr.mxu0 0.0
    %63 = vmatpush1.xpose.msra.mxu0 %v60
    %64 = vmatprep.subr.mxu0 0.0
    %65 = vmatpush1.xpose.msra.mxu0 %v59
    %66 = vmatprep.subr.mxu0 0.0
    %67 = vmatpush1.xpose.msra.mxu0 %v58
    %68 = vmatprep.subr.mxu0 0.0
    %69 = vmatpush1.xpose.msra.mxu0 %v57
    %70 = vmatprep.subr.mxu0 0.0
    %71 = vmatpush1.xpose.msra.mxu0 %v56
    %72 = vmatprep.subr.mxu0 0.0
    %73 = vmatpush1.xpose.msra.mxu0 %v55
    %74 = vmatprep.subr.mxu0 0.0
    %75 = vmatpush1.xpose.msra.mxu0 %v54
    %76 = vmatprep.subr.mxu0 0.0
    %77 = vmatpush1.xpose.msra.mxu0 %v53
    %78 = vmatprep.subr.mxu0 0.0
    %79 = vmatpush1.xpose.msra.mxu0 %v52
    %80 = vmatprep.subr.mxu0 0.0
    %81 = vmatpush1.xpose.msra.mxu0 %v51
    %82 = vmatprep.subr.mxu0 0.0
    %83 = vmatpush1.xpose.msra.mxu0 %v50
    %84 = vmatprep.subr.mxu0 0.0
    %85 = vmatpush1.xpose.msra.mxu0 %v49
    %86 = vmatprep.subr.mxu0 0.0
    %87 = vmatpush1.xpose.msra.mxu0 %v48
    %88 = vmatprep.subr.mxu0 0.0
    %89 = vmatpush1.xpose.msra.mxu0 %v47
    %90 = vmatprep.subr.mxu0 0.0
    %91 = vmatpush1.xpose.msra.mxu0 %v46
    %92 = vmatprep.subr.mxu0 0.0
    %93 = vmatpush1.xpose.msra.mxu0 %v45
    %94 = vmatprep.subr.mxu0 0.0
    %95 = vmatpush2.xpose.msra.mxu0 0.0
    %96 = vmatprep.subr.mxu0 0.0
    %97 = vmatpush2.xpose.msra.mxu0 0.0
    %98 = vmatprep.subr.mxu0 0.0
    %99 = vmatpush2.xpose.msra.mxu0 0.0
    %100 = vmatprep.subr.mxu0 0.0
    %101 = vmatpush2.xpose.msra.mxu0 0.0
    %102 = vmatprep.subr.mxu0 0.0
    %103 = vmatpush2.xpose.msra.mxu0 0.0
    %104 = vmatprep.subr.mxu0 0.0
    %105 = vmatpush2.xpose.msra.mxu0 0.0
    %106 = vmatprep.subr.mxu0 0.0
    %107 = vmatpush2.xpose.msra.mxu0 0.0
    %108 = vmatprep.subr.mxu0 0.0
    %109 = vmatpush2.xpose.msra.mxu0 0.0
    %110 = vmatprep.subr.mxu0 0.0
    %111 = vmatpush2.xpose.msra.mxu0 0.0
    %112 = vmatprep.subr.mxu0 0.0
    %113 = vmatpush2.xpose.msra.mxu0 0.0
    %114 = vmatprep.subr.mxu0 0.0
    %115 = vmatpush2.xpose.msra.mxu0 0.0
    %116 = vmatprep.subr.mxu0 0.0
    %117 = vmatpush2.xpose.msra.mxu0 0.0
    %118 = vmatprep.subr.mxu0 0.0
    %119 = vmatpush2.xpose.msra.mxu0 0.0
    %120 = vmatprep.subr.mxu0 0.0
    %121 = vmatpush2.xpose.msra.mxu0 0.0
    %122 = vmatprep.subr.mxu0 0.0
    %123 = vmatpush2.xpose.msra.mxu0 0.0
    %124 = vmatprep.subr.mxu0 0.0
    %125 = vmatpush2.xpose.msra.mxu0 0.0
    %126 = vmatprep.mubr.f32.mxu0 0.0
    %127 = vmatmul.mubr.f32.gmra.mxu0 %v61
    %v128 = vpop.f32.mrf.mxu0
    %v129 = vadd.f32 0.0, %v128
    %v130 = vpop.f32.mrf.mxu0
    %131 = vdwg.mxu0
    %v132 = vmul.f32 %v129, 64.0
    %v133 = vld [vmem:[%s2] sm:$0xff]
    %v134 = vlaneseq
    %v135 = vand.u32 %v134, 127
    %s136 = smul.u32 0, 128
    %v137 = vstv %s136
    %v138 = vadd.s32 %v135, %v137
    %139 = vset.pattern.permute.xlu0 0
    %140 = vperm.xlu0 %139, %v133
    %v141 = vpop.permute.xlu0 %140
    %vm142 = vcmp.eq.s32.totalorder %v138, %v141
    %vm143 = vcmp.lt.s32.totalorder %v138, 16
    %v144 = vld [vmem:[#allocation5] sm:$0xff]
    %v145 = vsel %vm142, %v129, 0.0
    %146 = vadd.xlane.f32.xlu0 %v145
    %v147 = vpop.xlane.xlu0 %146
    %v148 = vadd.f32 %v144, %v147
    %vm149 = vcmask 7168
    %150 = vst.msk [vmem:[#allocation5] sm:$0xff] %vm149, %v148
    %v151 = vsel %vm143, %v132, -1e+30
    %v152 = vld [vmem:[#allocation3] sm:$0xff]
    %153 = vmax.xlane.f32.xlu0 %v151
    %v154 = vpop.xlane.xlu0 %153
    %v155 = vmax.f32 %v152, %v154
    %v156 = vsub.f32 %v152, %v155
    %v157 = vmul.f32 %v156, 1.442695
    %v158 = vpow.pop %v157
    %v159 = vld [vmem:[#allocation4] sm:$0xff]
    %v160 = vmul.f32 %v158, %v159
    %162 = vset.pattern.permute.xlu0 0
    %163 = vperm.xlu0 %162, %v155
    %v164 = vpop.permute.xlu0 %163
    %v166 = vsub.f32 %v151, %v164
    %v167 = vmul.f32 %v166, 1.442695
    %v168 = vpow.pop %v167
    %169 = vadd.xlane.f32.xlu0 %v168
    %v170 = vpop.xlane.xlu0 %169
    %v171 = vadd.f32 %v160, %v170
    %172 = vst.msk [vmem:[#allocation4] sm:$0xff] %vm149, %v171
    %173 = vst.msk [vmem:[#allocation3] sm:$0xff] %vm149, %v155
    // Predicated region
    $region22: #{tpu_custom_call.1} parent=1 // pred_check
      %p174 = pneg %p29
    $region23: #{tpu_custom_call.1} parent=1 // pred_check_branch
      %176 = sbr.rel (%p174) target = $region25
    $region24: #{tpu_custom_call.1} parent=1 // pred_region
      %v177 = vld [vmem:[#allocation5] sm:$0xff]
      %v178 = vmax.f32 %v177, -0.9999999
      %v179 = vmin.f32 %v178, 0.9999999
      %v180 = vmul.f32 %v179, 0.87758255
      %v181 = vmul.f32 %v179, %v179
      %v182 = vsub.f32 1.0, %v181
      %v183 = vrsqrt.pop %v182
      %v184 = vmul.f32 %v182, %v183
      %vm185 = vcmp.eq.f32.partialorder %v182, inf
      %v186 = vsel %vm185, %v182, %v184
      %vm187 = vcmp.eq.f32.partialorder %v182, 0.0
      %v188 = vand.u32 %v182, 2147483648
      %v189 = vsel %vm187, %v188, %v186
      %v190 = vmul.f32 %v189, 0.47942555
      %v191 = vsub.f32 %v180, %v190
      %v192 = vmul.f32 %v191, 64.0
      %v193 = vld [vmem:[#allocation3] sm:$0xff]
      %v194 = vld [vmem:[#allocation4] sm:$0xff]
      %v195 = vmax.f32 %v192, %v193
      %v196 = vsub.f32 %v193, %v195
      %v197 = vmul.f32 %v196, 1.442695
      %v198 = vpow.pop %v197
      %v199 = vmul.f32 %v194, %v198
      %v200 = vmul.f32 %v177, 64.0
      %v201 = vsub.f32 %v200, %v195
      %v202 = vmul.f32 %v201, 1.442695
      %v203 = vpow.pop %v202
      %v204 = vsub.f32 %v199, %v203
      %v205 = vsub.f32 %v192, %v195
      %v206 = vmul.f32 %v205, 1.442695
      %v207 = vpow.pop %v206
      %v208 = vadd.f32 %v207, %v204
      %v209 = vlog2.pop %v208
      %v210 = vmul.f32 %v209, 0.6931472
      %v211 = vadd.f32 %v195, %v210
      %v212 = vsub.f32 %v192, %v211
      %214 = vset.pattern.permute.xlu0 0
      %215 = vperm.xlu0 %214, %v212
      %v216 = vpop.permute.xlu0 %215
      %218 = vst [vmem:[#allocation9] sm:$0xff] %v216
    $region25: #{tpu_custom_call.1} parent=1 // pred_fallthru
      _
    // Predicated region
    $region26: #{tpu_custom_call.1} parent=1 // pred_check
      _
    $region27: #{tpu_custom_call.1} parent=1 // pred_check_branch
      %220 = sbr.rel (0) target = $region29
    $region28: #{tpu_custom_call.1} parent=1 // pred_region
      %s222 = ssub.s32 128, 128
      %223 = vsyncadd [#allocation8], %s222
      %s225 = sshll.u32 [#allocation9], 4
      %s226 = int_to_ptr.vmem [resolvable:$true] %s225
      %228 = dma.vmem_to_hbm [thread:$0]  %s226, 128, %s3, [#allocation8]
    $region29: #{tpu_custom_call.1} parent=1 // pred_fallthru
      _
    // Predicated region
    $region30: #{tpu_custom_call.1} parent=1 // pred_check
      _
    $region31: #{tpu_custom_call.1} parent=1 // pred_check_branch
      %230 = sbr.rel (0) target = $region33
    $region32: #{tpu_custom_call.1} parent=1 // pred_region
      %231 = dma.done [#allocation8], 128
    $region33: #{tpu_custom_call.1} parent=1 // pred_fallthru
      _
    %232 = vsyncpa [#allocation7], 1
    %233 = vsyncpa [#allocation8], 1

</llo_original>
